<compile_context>
chip_gen: v5e
topology: v5e:2x2
jax: 0.10.0
libtpu: 0.0.40
codegen_flags: <defaults>
</compile_context>

<pallas_src>
from functools import partial

import jax
import jax.numpy as jnp
from jax.experimental import pallas as pl
from jax.experimental.pallas import tpu as pltpu


def _round_up(v, m):
    return ((v + m - 1) // m) * m


def _spatial_attn_kernel(n_strips, strip, w_ref, x_ref, o_ref):
    """One (gb, C, hw_t) input block -> one (gb, hw_t) attention-map block.

    w_ref: (1, 2) f32 in SMEM -> [w_avg / C, w_max]  (mean scale pre-folded)
    x_ref: (gb, C, hw_t) native-dtype block in VMEM
    o_ref: (gb, hw_t) block in VMEM (same dtype as the input)
    """
    w_sum = w_ref[0, 0]          # = w_avg / C  (channel-mean scale folded on host)
    w_max = w_ref[0, 1]

    def combine(x_blk):
        xf = x_blk.astype(jnp.float32)      # upcast after the load (v5e-safe)
        s = jnp.sum(xf, axis=1)             # dense sublane reduce over channels
        m = jnp.max(xf, axis=1)
        return jax.nn.sigmoid(w_sum * s + w_max * m).astype(o_ref.dtype)

    if n_strips == 1:
        o_ref[...] = combine(x_ref[...])
    else:
        # Strip-mine the lane axis so accumulators stay register-resident while
        # the DMA block stays large.
        @pl.loop(0, n_strips)
        def _(i):
            off = pl.multiple_of(i * strip, 128)
            o_ref[:, pl.ds(off, strip)] = combine(x_ref[:, :, pl.ds(off, strip)])


def _choose_tiles(n, c, hw, x_itemsize, target_block_bytes, min_steps=4):
    """Pick (gb, hw_t) respecting (8,128) rules, the VMEM budget and step guards."""
    c_pad = _round_up(c, 8)                 # VMEM sublane padding when C % 8 != 0

    # Legal batch-group tiles: multiples of 8 dividing N, plus full N.
    gb_cands = sorted({g for g in range(8, n + 1, 8) if n % g == 0} | {n})
    # Legal lane tiles: multiples of 128 dividing HW, else the full (masked) HW.
    if hw % 128 == 0:
        hw_cands = sorted(d for d in range(128, hw + 1, 128) if hw % d == 0)
    else:
        # TODO(synk): non-128-multiple HW (e.g. 7x7) keeps masked lane stores.
        hw_cands = [hw]

    def in_block_bytes(g, t):
        return g * c_pad * _round_up(t, 128) * x_itemsize

    # Largest block under the budget, preferring full-HW lane tiles (one
    # contiguous HBM extent per block), then the largest fitting gb.
    choice = None
    for t in reversed(hw_cands):
        for g in reversed(gb_cands):
            if in_block_bytes(g, t) <= target_block_bytes:
                choice = (g, t)
                break
        if choice is not None:
            break
    if choice is None:                      # nothing fits: smallest legal block
        choice = (gb_cands[0], hw_cands[0])
    gb, hw_t = choice

    # Step-count guard: keep >= min_steps grid steps when legally possible so
    # the DMA pipeline overlaps and v7x's second TensorCore gets work.  Shrink
    # gb first (keeps full-HW rows contiguous), then hw_t.
    def steps(g, t):
        return (n // g) * (hw // t)

    while steps(gb, hw_t) < min_steps:
        smaller_gb = [g for g in gb_cands if g < gb]
        smaller_hw = [t for t in hw_cands if t < hw_t]
        if smaller_gb:
            gb = smaller_gb[-1]
        elif smaller_hw:
            hw_t = smaller_hw[-1]
        else:
            break
    return gb, hw_t


def _choose_strip(gb, c, hw_t, max_working_vregs=40):
    """Lane-strip width keeping the per-strip f32 working set register-friendly."""
    if hw_t % 128 != 0:
        return hw_t                         # single strip; lanes masked anyway
    c_pad = _round_up(c, 8)
    target = (max_working_vregs * 1024) // (gb * c_pad)   # 1024 f32 per vreg
    target = max(128, min(512, (target // 128) * 128))
    strip = 128
    for d in range(128, hw_t + 1, 128):
        if hw_t % d == 0 and d <= target:
            strip = d
    return strip


def maxpool_spatial_attention(x, conv_weight, *, target_block_bytes=4 << 20):
    """x: (N, C, H, W); conv_weight: (1, 2, 1, 1) -> (N, 1, H, W) in x.dtype."""
    N, C, H, W = x.shape
    HW = H * W

    # Free reshape; native dtype (no host-side astype pass over the tensor).
    x3d = x.reshape(N, C, HW)

    # Fold the 1/C of the channel mean into the conv weight (host scalar fold).
    # NOTE: sum-then-scale vs mean-then-scale; identical within f32 tolerance.
    w = conv_weight.reshape(2).astype(jnp.float32)
    w_tbl = jnp.stack([w[0] / C, w[1]]).reshape(1, 2)

    x_itemsize = jnp.dtype(x.dtype).itemsize
    gb, hw_t = _choose_tiles(N, C, HW, x_itemsize, target_block_bytes)
    strip = _choose_strip(gb, C, hw_t)
    n_strips = hw_t // strip
    grid = (N // gb, HW // hw_t)

    # Double-buffered VMEM footprint (sublane/lane padding included).  Only
    # raise the scoped-VMEM limit when the v5e 16 MiB default would be tight,
    # and never beyond 48 MiB (safe on v7x's 64 MiB part).
    c_pad = _round_up(C, 8)
    in_blk = gb * c_pad * _round_up(hw_t, 128) * x_itemsize
    out_blk = _round_up(gb, 8) * _round_up(hw_t, 128) * x_itemsize
    vmem_needed = 2 * (in_blk + out_blk)
    params = dict(dimension_semantics=("parallel", "parallel"))
    if vmem_needed > (14 << 20):
        params["vmem_limit_bytes"] = min(48 << 20, vmem_needed + (4 << 20))

    out2d = pl.pallas_call(
        partial(_spatial_attn_kernel, n_strips, strip),
        out_shape=jax.ShapeDtypeStruct((N, HW), x.dtype),
        grid_spec=pltpu.PrefetchScalarGridSpec(
            num_scalar_prefetch=0,
            grid=grid,
            in_specs=[
                # tiny weight table lives in SMEM, untiled
                pl.BlockSpec(memory_space=pltpu.MemorySpace.SMEM),
                # gb batch elements x the full channel extent x one lane tile
                pl.BlockSpec((gb, C, hw_t), lambda i, j: (i, 0, j)),
            ],
            out_specs=pl.BlockSpec((gb, hw_t), lambda i, j: (i, j)),
        ),
        compiler_params=pltpu.CompilerParams(**params),
    )(w_tbl, x3d)

    return out2d.reshape(N, 1, H, W)


def _reference(x, conv_weight):
    avg_out = jnp.mean(x, axis=1, keepdims=True)
    max_out = jnp.max(x, axis=1, keepdims=True)
    cat = jnp.concatenate([avg_out, max_out], axis=1)        # (N, 2, H, W)
    w = conv_weight.reshape(1, 2)                             # (out=1, in=2)
    y = jnp.einsum("oc,nchw->nohw", w, cat)
    return jax.nn.sigmoid(y)


if __name__ == "__main__":
    key = jax.random.PRNGKey(0)
    kx1, kx2, kw = jax.random.split(key, 3)

    # Deterministic 1x1 conv weight (2 -> 1 channels, no bias).
    conv_weight = jax.random.normal(kw, (1, 2, 1, 1), dtype=jnp.float32) * 0.5

    # Case 1: small shape consistent with the module (NCHW, C=4); single strip.
    N, C, H, W = 2, 4, 16, 16
    x1 = jax.random.normal(kx1, (N, C, H, W), dtype=jnp.float32)
    out1 = jax.block_until_ready(maxpool_spatial_attention(x1, conv_weight))
    ref1 = _reference(x1, conv_weight)
    assert out1.shape == (N, 1, H, W)
    assert jnp.allclose(out1, ref1, atol=1e-5, rtol=1e-5)

    # Case 2: exercises 8-row batch groups, >=4 grid steps along the HW axis
    # and the in-kernel lane-strip loop.
    N2, C2, H2, W2 = 8, 4, 48, 64
    x2 = jax.random.normal(kx2, (N2, C2, H2, W2), dtype=jnp.float32)
    out2 = jax.block_until_ready(maxpool_spatial_attention(x2, conv_weight))
    ref2 = _reference(x2, conv_weight)
    assert out2.shape == (N2, 1, H2, W2)
    assert jnp.allclose(out2, ref2, atol=1e-5, rtol=1e-5)

    print("KERNEL_OK")
</pallas_src>

<mosaic_0001>
module attributes {stable_mosaic.version = 11 : i64} {
  func.func @_spatial_attn_kernel(%arg0: i32, %arg1: i32, %arg2: memref<1x2xf32, #tpu.memory_space<smem>>, %arg3: memref<2x4x128xf32, #tpu.memory_space<vmem>>, %arg4: memref<2x128xf32, #tpu.memory_space<vmem>>) attributes {dimension_semantics = [#tpu.dimension_semantics<parallel>, #tpu.dimension_semantics<parallel>], iteration_bounds = array<i64: 1, 2>, scalar_prefetch = 0 : i64, scratch_operands = 0 : i64, tpu.core_type = #tpu.core_type<tc>, window_params = [{transform_indices = @transform_0, window_bounds = array<i64: 1, 2>}, {transform_indices = @transform_1, window_bounds = array<i64: 2, 4, 128>}, {transform_indices = @transform_2, window_bounds = array<i64: 2, 128>}]} {
    %c0 = arith.constant 0 : index
    %c0_0 = arith.constant 0 : index
    %0 = memref.load %arg2[%c0, %c0_0] : memref<1x2xf32, #tpu.memory_space<smem>>
    %c0_1 = arith.constant 0 : index
    %c1 = arith.constant 1 : index
    %1 = memref.load %arg2[%c0_1, %c1] : memref<1x2xf32, #tpu.memory_space<smem>>
    %c0_2 = arith.constant 0 : index
    %c0_3 = arith.constant 0 : index
    %c0_4 = arith.constant 0 : index
    %2 = vector.load %arg3[%c0_2, %c0_3, %c0_4] : memref<2x4x128xf32, #tpu.memory_space<vmem>>, vector<2x4x128xf32>
    %cst = arith.constant dense<0.000000e+00> : vector<2x128xf32>
    %3 = vector.multi_reduction <add>, %2, %cst [1] : vector<2x4x128xf32> to vector<2x128xf32>
    %cst_5 = arith.constant dense<0xFF800000> : vector<2x128xf32>
    %4 = vector.multi_reduction <maximumf>, %2, %cst_5 [1] : vector<2x4x128xf32> to vector<2x128xf32>
    %5 = vector.broadcast %0 : f32 to vector<2x128xf32>
    %6 = arith.mulf %5, %3 : vector<2x128xf32>
    %7 = vector.broadcast %1 : f32 to vector<2x128xf32>
    %8 = arith.mulf %7, %4 : vector<2x128xf32>
    %9 = arith.addf %6, %8 : vector<2x128xf32>
    %10 = arith.negf %9 : vector<2x128xf32>
    %11 = math.exp %10 : vector<2x128xf32>
    %cst_6 = arith.constant 1.000000e+00 : f32
    %12 = vector.broadcast %cst_6 : f32 to vector<2x128xf32>
    %13 = arith.addf %12, %11 : vector<2x128xf32>
    %14 = arith.divf %12, %13 : vector<2x128xf32>
    %c0_7 = arith.constant 0 : index
    %c0_8 = arith.constant 0 : index
    %15 = vector.load %arg4[%c0_7, %c0_8] : memref<2x128xf32, #tpu.memory_space<vmem>>, vector<2x128xf32>
    tpu.vector_store %arg4[%c0_7, %c0_8], %14 {strides = array<i32>} : memref<2x128xf32, #tpu.memory_space<vmem>>, vector<2x128xf32>,
    return
  }
  func.func @transform_0(%arg0: i32, %arg1: i32) -> (i32, i32) {
    %c0_i32 = arith.constant 0 : i32
    %c0_i32_0 = arith.constant 0 : i32
    %c0_i32_1 = arith.constant 0 : i32
    return %c0_i32, %c0_i32_0 : i32, i32
  }
  func.func @transform_1(%arg0: i32, %arg1: i32) -> (i32, i32, i32) {
    %c0_i32 = arith.constant 0 : i32
    %c0_i32_0 = arith.constant 0 : i32
    return %arg0, %c0_i32, %arg1 : i32, i32, i32
  }
  func.func @transform_2(%arg0: i32, %arg1: i32) -> (i32, i32) {
    %c0_i32 = arith.constant 0 : i32
    return %arg0, %arg1 : i32, i32
  }
}

</mosaic_0001>

<llo_original>
// kernel: tpu_custom_call.1
$region0: #{tpu_custom_call.1}
  #allocation0 [shape = 'u32[]', space=smem, size = 0x4, offset = 0x4, fixed_abs, tag = 'smem constant byte address 0x4 - core index']
  #allocation1 [shape = 'u32[72,128]{1,0:T(1,128)}', space=vmem, size = 0x9000, scoped, tag = 'internal scratch']
  %s0 = inlined_call_operand.hbm [shape: f32[1,2], index: 0, kind: input, shape index: {}]
  %s1 = inlined_call_operand.hbm [shape: f32[2,4,256], index: 1, kind: input, shape index: {}]
  %s2 = inlined_call_operand.hbm [shape: f32[2,256], index: 2, kind: output, shape index: {}]
  %s3 = sld [smem:[#allocation0]]
  $region49: #{tpu_custom_call.1} parent=0
    _
  %s5 = ssub.s32 1, %s3
  %s6 = scalar_select 0, %s5, %s3
  $region1: #{tpu_custom_call.1} parent=0
    #allocation2 [shape = 'u8[512]{0}', space=smem, size = 0x200, scoped, tag = 'input window, operand 0, single buffered']
    #allocation3 [shape = 's32[2]{0}', space=sflag, size = 0x8, scoped, tag = 'scoped memory for tpu_custom_call.1']
    #allocation4 [shape = 's32[2]{0}', space=sflag, size = 0x8, scoped, tag = 'scoped memory for tpu_custom_call.1']
    #allocation5 [shape = 's32[2]{0}', space=sflag, size = 0x8, scoped, tag = 'scoped memory for tpu_custom_call.1']
    #allocation6 [shape = 'u8[8192]{0}', space=vmem, size = 0x2000, scoped, tag = 'input window, operand 1']
    #allocation7 [shape = 'u8[2048]{0}', space=vmem, size = 0x800, scoped, tag = 'output window, operand 0']
    %7 = vsyncpa [#allocation5], 0
    %8 = vsyncpa [#allocation3], 0
    %s9 = scalar_lea.sflag [#allocation3], 1
    %10 = vsyncpa %s9, 0
    %11 = vsyncpa [#allocation4], 0
    %s12 = scalar_lea.sflag [#allocation4], 1
    %13 = vsyncpa %s12, 0
    loop: start=0, step=1, limit=4
    $region2: #{tpu_custom_call.1} parent=1 // loop_pre_header
      _
    $region3: #{tpu_custom_call.1} parent=1 // loop_header
      %s15 = sphi 0, %s19
      %p16 = scmp.ge.s32.totalorder %s15, 4
      %s22 = sphi 0, %s34
      %s23 = sphi 0, %s30
      %s24 = sphi 0, %s22
      %s25 = sphi 0, %s23
      %s26 = sphi 0, %s24
      %s27 = sphi 0, %s25
      %s35 = sphi 0, %s35
      %s37 = sphi 0, %s35
      %s38 = sphi 0, %s37
      %s52 = sphi 0, %s38
      %s60 = sphi 0, %s62
      %s63 = sphi 0, %s60
      %s64 = sphi 0, %s63
      %s80 = sphi 0, %s64
      %s88 = sphi 0, %s90
      %s91 = sphi 0, %s88
      %s92 = sphi 0, %s91
      %s108 = sphi 0, %s92
    $region4: #{tpu_custom_call.1} parent=1 // loop_header_branch
      %18 = sbr.rel (%p16) target = $region8
    $region5: #{tpu_custom_call.1} parent=1 // loop_body
      %s20 = ssub.s32 %s15, 1
      %s21 = ssub.s32 %s15, 2
      %s28 = sadd.s32 1, %s23
      %p29 = scmp.ge.s32.totalorder %s28, 2
      %s30 = scalar_select %p29, 0, %s28
      %s31 = sadd.s32 1, %s22
      %s32 = scalar_select %p29, %s31, %s22
      %p33 = scmp.ge.s32.totalorder %s32, 1
      %s34 = scalar_select %p33, 0, %s32
      %s36 = sadd.s32 %s35, 1
      %p39 = scmp.eq.s32.totalorder %s15, 1
      %p40 = scmp.ne.s32.totalorder %s35, %s37
      %p41 = scmp.eq.s32.totalorder %s15, 0
      %p42 = por %p40, %p41
      %p43 = scmp.ne.s32.totalorder %s35, %s37
      %p44 = scmp.eq.s32.totalorder %s20, 1
      %p45 = por %p43, %p44
      %p46 = scmp.ne.s32.totalorder %s37, %s38
      %p47 = scmp.eq.s32.totalorder %s20, 0
      %p48 = por %p46, %p47
      %p49 = scmp.ne.s32.totalorder %s37, %s38
      %p50 = scmp.eq.s32.totalorder %s21, 1
      %p51 = por %p49, %p50
      %p53 = scmp.ne.s32.totalorder %s38, %s52
      %p54 = scmp.eq.s32.totalorder %s21, 0
      %p55 = por %p53, %p54
      %s56 = ssub.s32 %s22, %s34
      %s57 = ssub.s32 %s23, %s30
      %s58 = sor.u32 %s56, %s57
      %p59 = scmp.eq.s32.totalorder %s58, 0
      %s61 = sadd.s32 %s60, 1
      %s62 = scalar_select %p59, %s60, %s61
      %p65 = pneg %p59
      %p66 = scmp.eq.s32.totalorder %s15, 1
      %p67 = por %p65, %p66
      %p68 = scmp.ne.s32.totalorder %s60, %s63
      %p69 = scmp.eq.s32.totalorder %s15, 0
      %p70 = por %p68, %p69
      %p71 = scmp.ne.s32.totalorder %s60, %s63
      %p72 = scmp.eq.s32.totalorder %s20, 1
      %p73 = por %p71, %p72
      %p74 = scmp.ne.s32.totalorder %s63, %s64
      %p75 = scmp.eq.s32.totalorder %s20, 0
      %p76 = por %p74, %p75
      %p77 = scmp.ne.s32.totalorder %s63, %s64
      %p78 = scmp.eq.s32.totalorder %s21, 1
      %p79 = por %p77, %p78
      %p81 = scmp.ne.s32.totalorder %s64, %s80
      %p82 = scmp.eq.s32.totalorder %s21, 0
      %p83 = por %p81, %p82
      %s84 = ssub.s32 %s22, %s34
      %s85 = ssub.s32 %s23, %s30
      %s86 = sor.u32 %s84, %s85
      %p87 = scmp.eq.s32.totalorder %s86, 0
      %s89 = sadd.s32 %s88, 1
      %s90 = scalar_select %p87, %s88, %s89
      %p93 = pneg %p87
      %p94 = scmp.eq.s32.totalorder %s15, 1
      %p95 = por %p93, %p94
      %p96 = scmp.ne.s32.totalorder %s88, %s91
      %p97 = scmp.eq.s32.totalorder %s15, 0
      %p98 = por %p96, %p97
      %p99 = scmp.ne.s32.totalorder %s88, %s91
      %p100 = scmp.eq.s32.totalorder %s20, 1
      %p101 = por %p99, %p100
      %p102 = scmp.ne.s32.totalorder %s91, %s92
      %p103 = scmp.eq.s32.totalorder %s20, 0
      %p104 = por %p102, %p103
      %p105 = scmp.ne.s32.totalorder %s91, %s92
      %p106 = scmp.eq.s32.totalorder %s21, 1
      %p107 = por %p105, %p106
      %p109 = scmp.ne.s32.totalorder %s92, %s108
      %p110 = scmp.eq.s32.totalorder %s21, 0
      %p111 = por %p109, %p110
      %p112 = scmp.le.s32.totalorder 1, %s15
      %p113 = scmp.lt.s32.totalorder %s15, 3
      %p114 = pnand %p112, %p113
      %p115 = pneg %p114
      // Predicated region
      $region9: #{tpu_custom_call.1} parent=5 // pred_check
        _
      $region10: #{tpu_custom_call.1} parent=5 // pred_check_branch
        %117 = sbr.rel (%p114) target = $region12
      $region11: #{tpu_custom_call.1} parent=5 // pred_region
        %s118 = ssub.s32 %s15, 1
        // Predicated region
        $region13: #{tpu_custom_call.1} parent=11 // pred_check
          %p119 = pneg %p48
        $region14: #{tpu_custom_call.1} parent=11 // pred_check_branch
          %121 = sbr.rel (%p119) target = $region16
        $region15: #{tpu_custom_call.1} parent=11 // pred_region
          %123 = vsyncadd [#allocation5], 0
          %s125 = sshll.u32 %s0, 4
          %s126 = int_to_ptr.hbm [resolvable:$true] %s125
          %128 = dma.hbm_to_smem %s126, 16, [#allocation2], [#allocation5]
        $region16: #{tpu_custom_call.1} parent=11 // pred_fallthru
          _
      $region12: #{tpu_custom_call.1} parent=5 // pred_fallthru
        _
      %p129 = scmp.lt.s32.totalorder %s15, 2
      // Predicated region
      $region17: #{tpu_custom_call.1} parent=5 // pred_check
        %p130 = pneg %p129
      $region18: #{tpu_custom_call.1} parent=5 // pred_check_branch
        %132 = sbr.rel (%p130) target = $region20
      $region19: #{tpu_custom_call.1} parent=5 // pred_region
        // Predicated region
        $region21: #{tpu_custom_call.1} parent=19 // pred_check
          %p133 = pneg %p70
        $region22: #{tpu_custom_call.1} parent=19 // pred_check_branch
          %135 = sbr.rel (%p133) target = $region24
        $region23: #{tpu_custom_call.1} parent=19 // pred_region
          %s136 = sand.u32 %s60, 1
          %s137 = scalar_lea.sflag [#allocation3], %s136
          %s138 = sand.u32 %s60, 1
          %s139 = smul.addr %s138, 8
          %s140 = scalar_lea.vmem [#allocation6], %s139
          %s141 = smul.u32 2, %s22
          %143 = vsyncadd %s137, 0
          %s144 = smul.addr %s141, 2
          %s145 = sadd.s32 %s23, %s144
          %s146 = smul.addr %s145, 4
          %s147 = scalar_lea.hbm %s1, %s146
          %s148 = sshll.u32 %s147, 4
          %s149 = int_to_ptr.hbm [resolvable:$true] %s148
          %s150 = sshll.u32 %s140, 4
          %s151 = int_to_ptr.vmem [resolvable:$true] %s150
          %156 = dma.hbm_to_vmem [thread:$0]  %s149, 128, %s151, %s137, 128, 64, 4
        $region24: #{tpu_custom_call.1} parent=19 // pred_fallthru
          _
      $region20: #{tpu_custom_call.1} parent=5 // pred_fallthru
        _
      %p157 = scmp.le.s32.totalorder 1, %s15
      %p158 = scmp.lt.s32.totalorder %s15, 3
      %p159 = pnand %p157, %p158
      %p160 = pneg %p159
      // Predicated region
      $region25: #{tpu_custom_call.1} parent=5 // pred_check
        _
      $region26: #{tpu_custom_call.1} parent=5 // pred_check_branch
        %162 = sbr.rel (%p159) target = $region28
      $region27: #{tpu_custom_call.1} parent=5 // pred_region
        %s163 = ssub.s32 %s15, 1
        // Predicated region
        $region29: #{tpu_custom_call.1} parent=27 // pred_check
          %p164 = pneg %p48
        $region30: #{tpu_custom_call.1} parent=27 // pred_check_branch
          %166 = sbr.rel (%p164) target = $region32
        $region31: #{tpu_custom_call.1} parent=27 // pred_region
          %168 = dma.done [#allocation5], 16
        $region32: #{tpu_custom_call.1} parent=27 // pred_fallthru
          _
        %s169 = sand.u32 %s63, 1
        %s170 = scalar_lea.sflag [#allocation3], %s169
        %s171 = sand.u32 %s63, 1
        %s172 = smul.addr %s171, 8
        %s173 = scalar_lea.vmem [#allocation6], %s172
        // Predicated region
        $region33: #{tpu_custom_call.1} parent=27 // pred_check
          %p174 = pneg %p76
        $region34: #{tpu_custom_call.1} parent=27 // pred_check_branch
          %176 = sbr.rel (%p174) target = $region36
        $region35: #{tpu_custom_call.1} parent=27 // pred_region
          %178 = dma.done %s170, 128
        $region36: #{tpu_custom_call.1} parent=27 // pred_fallthru
          _
        %179 = sfence
        %p180 = pneg %p48
        %p181 = pneg %p45
        %s182 = sand.u32 %s63, 1
        %s183 = scalar_lea.sflag [#allocation3], %s182
        %s184 = sand.u32 %s63, 1
        %s185 = smul.addr %s184, 8
        %s186 = scalar_lea.vmem [#allocation6], %s185
        %p187 = pneg %p76
        %p188 = pneg %p73
        %p189 = pneg %p104
        %p190 = pneg %p101
        %s191 = sand.u32 %s91, 1
        %s192 = scalar_lea.sflag [#allocation4], %s191
        %s193 = sand.u32 %s91, 1
        %s194 = smul.addr %s193, 2
        %s195 = scalar_lea.vmem [#allocation7], %s194
        %s196 = smul.u32 2, %s24
        %s197 = sld [smem:[#allocation2]]
        %s198 = sld [smem:[#allocation2 + $0x1]]
        %v199 = vld [vmem:[%s173] sm:$0xf]
        %v200 = vld [vmem:[%s173 + $0x4] sm:$0xf]
        %vm201 = vcmask 1043456
        %v202 = vsel %vm201, %v199, 0.0
        %v203 = vrot.slane %v202, 4
        %v204 = vadd.f32 %v202, %v203
        %v205 = vrot.slane %v204, 2
        %v206 = vadd.f32 %v204, %v205
        %v207 = vrot.slane %v206, 1
        %v208 = vadd.f32 %v206, %v207
        %v209 = vsel %vm201, %v200, 0.0
        %v210 = vrot.slane %v209, 4
        %v211 = vadd.f32 %v209, %v210
        %v212 = vrot.slane %v211, 2
        %v213 = vadd.f32 %v211, %v212
        %v214 = vrot.slane %v213, 1
        %v215 = vadd.f32 %v213, %v214
        %v216 = vsel %vm201, %v199, -inf
        %v217 = vrot.slane %v216, 4
        %v218 = vmax.f32 %v216, %v217
        %v219 = vrot.slane %v218, 2
        %v220 = vmax.f32 %v218, %v219
        %v221 = vrot.slane %v220, 1
        %v222 = vmax.f32 %v220, %v221
        %v223 = vsel %vm201, %v200, -inf
        %v224 = vrot.slane %v223, 4
        %v225 = vmax.f32 %v223, %v224
        %v226 = vrot.slane %v225, 2
        %v227 = vmax.f32 %v225, %v226
        %v228 = vrot.slane %v227, 1
        %v229 = vmax.f32 %v227, %v228
        %v230 = vstv %s197
        %v231 = vmul.f32 %v230, %v208
        %v232 = vmul.f32 %v230, %v215
        %v233 = vstv %s198
        %v234 = vmul.f32 %v233, %v222
        %v235 = vmul.f32 %v233, %v229
        %v236 = vadd.f32 %v231, %v234
        %v237 = vadd.f32 %v232, %v235
        %v238 = vxor.u32 %v236, 2147483648
        %v239 = vxor.u32 %v237, 2147483648
        %v240 = vmul.f32 %v238, 1.442695
        %v241 = vpow.pop %v240
        %v242 = vmul.f32 %v239, 1.442695
        %v243 = vpow.pop %v242
        %v244 = vadd.f32 %v241, 1.0
        %v245 = vadd.f32 %v243, 1.0
        %v246 = vrcp.pop %v244
        %v247 = vmul.f32 %v244, %v246
        %v248 = vsub.f32 1.0, %v247
        %v249 = vmul.f32 %v246, %v248
        %v250 = vadd.f32 %v246, %v249
        %vm251 = vweird.f32 %v244
        %vm252 = vweird.f32 %v246
        %vm253 = vmor %vm251, %vm252
        %v254 = vsel %vm253, %v246, %v250
        %v255 = vand.u32 2147483647, %v244
        %vm256 = vcmp.eq.f32.partialorder %v255, 8.507059e+37
        %v257 = vand.u32 %v244, 2147483648
        %v258 = vor.u32 1.1754944e-38, %v257
        %v259 = vsel %vm256, %v258, %v254
        %v260 = vmul.f32 1.0, %v259
        %v261 = vrcp.pop %v245
        %v262 = vmul.f32 %v245, %v261
        %v263 = vsub.f32 1.0, %v262
        %v264 = vmul.f32 %v261, %v263
        %v265 = vadd.f32 %v261, %v264
        %vm266 = vweird.f32 %v245
        %vm267 = vweird.f32 %v261
        %vm268 = vmor %vm266, %vm267
        %v269 = vsel %vm268, %v261, %v265
        %v270 = vand.u32 2147483647, %v245
        %vm271 = vcmp.eq.f32.partialorder %v270, 8.507059e+37
        %v272 = vand.u32 %v245, 2147483648
        %v273 = vor.u32 1.1754944e-38, %v272
        %v274 = vsel %vm271, %v273, %v269
        %v275 = vmul.f32 1.0, %v274
        %vm278 = vcmask 1041409
        %v279 = vsel %vm278, %v275, %v260
        %281 = vst [vmem:[%s195] sm:$0x3] %v279
        %s282 = sand.u32 %s91, 1
        %s283 = scalar_lea.sflag [#allocation4], %s282
        %s284 = sand.u32 %s91, 1
        %s285 = smul.addr %s284, 2
        %s286 = scalar_lea.vmem [#allocation7], %s285
        // Predicated region
        $region37: #{tpu_custom_call.1} parent=27 // pred_check
          %p287 = pneg %p101
        $region38: #{tpu_custom_call.1} parent=27 // pred_check_branch
          %289 = sbr.rel (%p287) target = $region40
        $region39: #{tpu_custom_call.1} parent=27 // pred_region
          %291 = vsyncadd %s283, 0
          %s292 = smul.addr %s24, 2
          %s293 = sadd.s32 %s25, %s292
          %s294 = smul.addr %s293, 2
          %s295 = scalar_lea.hbm %s2, %s294
          %s297 = sshll.u32 %s286, 4
          %s298 = int_to_ptr.vmem [resolvable:$true] %s297
          %s299 = sshll.u32 %s295, 4
          %s300 = int_to_ptr.hbm [resolvable:$true] %s299
          %302 = dma.vmem_to_hbm [thread:$0]  %s298, 32, %s300, %s283
        $region40: #{tpu_custom_call.1} parent=27 // pred_fallthru
          _
      $region28: #{tpu_custom_call.1} parent=5 // pred_fallthru
        _
      %p303 = scmp.le.s32.totalorder 2, %s15
      // Predicated region
      $region41: #{tpu_custom_call.1} parent=5 // pred_check
        %p304 = pneg %p303
      $region42: #{tpu_custom_call.1} parent=5 // pred_check_branch
        %306 = sbr.rel (%p304) target = $region44
      $region43: #{tpu_custom_call.1} parent=5 // pred_region
        %s307 = ssub.s32 %s15, 2
        // Predicated region
        $region45: #{tpu_custom_call.1} parent=43 // pred_check
          %p308 = pneg %p107
        $region46: #{tpu_custom_call.1} parent=43 // pred_check_branch
          %310 = sbr.rel (%p308) target = $region48
        $region47: #{tpu_custom_call.1} parent=43 // pred_region
          %s311 = sand.u32 %s92, 1
          %s312 = scalar_lea.sflag [#allocation4], %s311
          %s313 = sand.u32 %s92, 1
          %s314 = smul.addr %s313, 2
          %s315 = scalar_lea.vmem [#allocation7], %s314
          %317 = dma.done %s312, 32
        $region48: #{tpu_custom_call.1} parent=43 // pred_fallthru
          _
      $region44: #{tpu_custom_call.1} parent=5 // pred_fallthru
        _
    $region6: #{tpu_custom_call.1} parent=1 // loop_footer
      %s19 = sadd.s32 1, %s15
    $region7: #{tpu_custom_call.1} parent=1 // loop_footer_branch
      %14 = sbr.rel target = $region3
    $region8: #{tpu_custom_call.1} parent=1 // loop_exit
      _
    %318 = vsyncpa [#allocation3], 1
    %s319 = scalar_lea.sflag [#allocation3], 1
    %320 = vsyncpa %s319, 1
    %321 = vsyncpa [#allocation4], 1
    %s322 = scalar_lea.sflag [#allocation4], 1
    %323 = vsyncpa %s322, 1
    %324 = vsyncpa [#allocation5], 1
    %s325 = scalar_lea.sflag [#allocation5], 1
    %326 = vsyncpa %s325, 1

</llo_original>
